<compile_context>
chip_gen: v7x
topology: tpu7x:2x2x1
jax: 0.10.0
libtpu: 0.0.40
codegen_flags: <defaults>
</compile_context>

<pallas_src>
import jax
import jax.numpy as jnp
from jax.experimental import pallas as pl
from jax.experimental.pallas import tpu as pltpu


def _round_up(x, m):
    return (x + m - 1) // m * m


def _pick_s_tiles(s, max_tile=2048):
    """Pad the spatial axis to a multiple of 128 and choose a tile size."""
    s_pad = _round_up(max(s, 1), 128)
    if s_pad <= max_tile:
        return s_pad, s_pad
    s_pad = _round_up(s, max_tile)
    return s_pad, max_tile


# ----------------------------------------------------------------------------
# Pallas kernel 1: tiled matmul (folded 1x1x1 conv chain), bf16 in / f32 acc
# ----------------------------------------------------------------------------
def _matmul_kernel(x_ref, w_ref, o_ref):
    o_ref[...] = jnp.dot(
        x_ref[...], w_ref[...], preferred_element_type=jnp.float32
    ).astype(o_ref.dtype)


def pallas_matmul(x, w, *, tm=1024):
    """x: (M, K) f32, w: (K, N) f32 -> (M, N) f32 (bf16 MXU, f32 accumulate)."""
    M, K = x.shape
    K2, N = w.shape
    assert K == K2
    # Pad K to a bf16-friendly multiple; pad M so the grid tiles evenly.
    Kp = _round_up(K, 16)
    if Kp != K:
        x = jnp.pad(x, ((0, 0), (0, Kp - K)))
        w = jnp.pad(w, ((0, Kp - K), (0, 0)))
    tm = min(tm, _round_up(M, 8))
    Mp = _round_up(M, tm)
    if Mp != M:
        x = jnp.pad(x, ((0, Mp - M), (0, 0)))
    xb = x.astype(jnp.bfloat16)
    wb = w.astype(jnp.bfloat16)

    flops = 2 * Mp * Kp * N
    bytes_accessed = Mp * Kp * 2 + Kp * N * 2 + Mp * N * 4

    out = pl.pallas_call(
        _matmul_kernel,
        out_shape=jax.ShapeDtypeStruct((Mp, N), jnp.float32),
        grid=(Mp // tm,),
        in_specs=[
            pl.BlockSpec((tm, Kp), lambda i: (i, 0)),
            pl.BlockSpec((Kp, N), lambda i: (0, 0)),
        ],
        out_specs=pl.BlockSpec((tm, N), lambda i: (i, 0)),
        compiler_params=pltpu.CompilerParams(
            dimension_semantics=("parallel",),
            vmem_limit_bytes=32 * 1024 * 1024,
        ),
        cost_estimate=pl.CostEstimate(
            flops=flops, transcendentals=0, bytes_accessed=bytes_accessed
        ),
    )(xb, wb)
    return out[:M]


# ----------------------------------------------------------------------------
# Pallas kernel 2: batched masked average pooling (getFeatures)
#   mask: (G, 1, S), fts: (G, S, C)  ->  (G, 1, C)
#   out[g] = sum_s fts[g,s] * mask[g,s] / (sum_s mask[g,s] + 1e-5)
#   The axis-0 reduction is an MXU matmul (1,S)@(S,C); S is tiled with a
#   VMEM accumulator (init on first tile, divide+store on last tile).
# ----------------------------------------------------------------------------
def _masked_avg_kernel(mask_ref, fts_ref, o_ref, num_acc, den_acc):
    s = pl.program_id(1)

    @pl.when(s == 0)
    def _():
        num_acc[...] = jnp.zeros_like(num_acc)
        den_acc[...] = jnp.zeros_like(den_acc)

    m = mask_ref[0]                                            # (1, tS)
    f = fts_ref[0]                                             # (tS, C)
    num_acc[...] += jnp.dot(m, f, preferred_element_type=jnp.float32)
    den_acc[...] += jnp.sum(m, axis=1, keepdims=True)          # (1, 1)

    @pl.when(s == pl.num_programs(1) - 1)
    def _():
        o_ref[0] = num_acc[...] / (den_acc[...] + 1e-5)


def batched_masked_avg_pool(fts_g, mask_g):
    """fts_g: (G, S, C) f32, mask_g: (G, S) f32 -> (G, C) f32."""
    G, S, C = fts_g.shape
    s_pad, ts = _pick_s_tiles(S)
    if s_pad != S:
        fts_g = jnp.pad(fts_g, ((0, 0), (0, s_pad - S), (0, 0)))
        mask_g = jnp.pad(mask_g, ((0, 0), (0, s_pad - S)))
    mask_g = mask_g.reshape(G, 1, s_pad)
    n_s = s_pad // ts

    out = pl.pallas_call(
        _masked_avg_kernel,
        out_shape=jax.ShapeDtypeStruct((G, 1, C), jnp.float32),
        grid=(G, n_s),
        in_specs=[
            pl.BlockSpec((1, 1, ts), lambda g, s: (g, 0, s)),
            pl.BlockSpec((1, ts, C), lambda g, s: (g, s, 0)),
        ],
        out_specs=pl.BlockSpec((1, 1, C), lambda g, s: (g, 0, 0)),
        scratch_shapes=[
            pltpu.VMEM((1, C), jnp.float32),
            pltpu.VMEM((1, 1), jnp.float32),
        ],
        compiler_params=pltpu.CompilerParams(
            dimension_semantics=("parallel", "arbitrary"),
            vmem_limit_bytes=32 * 1024 * 1024,
        ),
    )(mask_g, fts_g)
    return out.reshape(G, C)


# ----------------------------------------------------------------------------
# Pallas kernel 3: fused negSim + getPred, batched over epi and ways
#   q: (B, S, C), protos: (B, Wa, C), t: (1, 1)  ->  (B, Wa, S)
#   cos  = <q, p> / max(||q|| * ||p||, 1e-8)
#   pred = 1 - sigmoid(0.5 * (-20 * cos - t))
#   Output is lane-dense along S (ways are rows), tiled over S.
# ----------------------------------------------------------------------------
def _negsim_pred_kernel(q_ref, p_ref, t_ref, o_ref):
    q = q_ref[0]                                               # (tS, C)
    p = p_ref[0]                                               # (Wa, C)
    t = t_ref[...]                                             # (1, 1)

    num = jax.lax.dot_general(
        p, q, (((1,), (1,)), ((), ())), preferred_element_type=jnp.float32
    )                                                          # (Wa, tS)
    ones_row = jnp.ones((1, q.shape[1]), jnp.float32)
    q_sq = jax.lax.dot_general(
        ones_row, q * q, (((1,), (1,)), ((), ())),
        preferred_element_type=jnp.float32,
    )                                                          # (1, tS)
    qn = jnp.sqrt(q_sq)                                        # (1, tS)
    pn = jnp.sqrt(jnp.sum(p * p, axis=1, keepdims=True))       # (Wa, 1)

    cos = num / jnp.maximum(pn * qn, 1e-8)
    negsim = -cos * 20.0
    o_ref[0] = 1.0 - jax.nn.sigmoid(0.5 * (negsim - t))


def batched_negsim_pred(q_bsc, protos_bwc, t_arr):
    """q: (B, S, C), protos: (B, Wa, C), t: (1,1) -> (B, Wa, S) f32."""
    B, S, C = q_bsc.shape
    n_ways = protos_bwc.shape[1]
    s_pad, ts = _pick_s_tiles(S)
    if s_pad != S:
        q_bsc = jnp.pad(q_bsc, ((0, 0), (0, s_pad - S), (0, 0)))
    n_s = s_pad // ts

    out = pl.pallas_call(
        _negsim_pred_kernel,
        out_shape=jax.ShapeDtypeStruct((B, n_ways, s_pad), jnp.float32),
        grid=(B, n_s),
        in_specs=[
            pl.BlockSpec((1, ts, C), lambda b, s: (b, s, 0)),
            pl.BlockSpec((1, n_ways, C), lambda b, s: (b, 0, 0)),
            pl.BlockSpec((1, 1), lambda b, s: (0, 0)),
        ],
        out_specs=pl.BlockSpec((1, n_ways, ts), lambda b, s: (b, 0, s)),
        compiler_params=pltpu.CompilerParams(
            dimension_semantics=("parallel", "parallel"),
            vmem_limit_bytes=32 * 1024 * 1024,
        ),
    )(q_bsc, protos_bwc, t_arr)
    return out[:, :, :S]


# ----------------------------------------------------------------------------
# Plain-JAX glue: interpolation helpers (match PyTorch F.interpolate semantics)
# ----------------------------------------------------------------------------
def _linear_interp_matrix(in_size, out_size):
    """1-D linear interp matrix, align_corners=True (out_size x in_size)."""
    if in_size == 1:
        return jnp.ones((out_size, 1), jnp.float32)
    o = jnp.arange(out_size, dtype=jnp.float32)
    if out_size == 1:
        src = jnp.zeros((1,), jnp.float32)
    else:
        src = o * (in_size - 1) / (out_size - 1)
    i0 = jnp.clip(jnp.floor(src).astype(jnp.int32), 0, in_size - 1)
    i1 = jnp.clip(i0 + 1, 0, in_size - 1)
    w1 = src - i0.astype(jnp.float32)
    w0 = 1.0 - w1
    W = jnp.zeros((out_size, in_size), jnp.float32)
    W = W.at[jnp.arange(out_size), i0].add(w0)
    W = W.at[jnp.arange(out_size), i1].add(w1)
    return W


def trilinear_resize(x, out_size):
    """x: (N, C, d, h, w) -> (N, C, D, H, W), trilinear, align_corners=True."""
    Wd = _linear_interp_matrix(x.shape[2], out_size[0])
    Wh = _linear_interp_matrix(x.shape[3], out_size[1])
    Ww = _linear_interp_matrix(x.shape[4], out_size[2])
    return jnp.einsum("Di,Hj,Wk,ncijk->ncDHW", Wd, Wh, Ww, x)


def nearest_resize_3d(m, out_size):
    """m: (d, h, w) -> out_size, nearest (PyTorch 'nearest': floor(o*in/out))."""
    d_in, h_in, w_in = m.shape
    idx_d = (jnp.arange(out_size[0]) * d_in) // out_size[0]
    idx_h = (jnp.arange(out_size[1]) * h_in) // out_size[1]
    idx_w = (jnp.arange(out_size[2]) * w_in) // out_size[2]
    return m[idx_d][:, idx_h][:, :, idx_w]


# ----------------------------------------------------------------------------
# Encoder: Conv3d(30,3,1) -> [resnext101 stub] -> Conv3d(2048,256,1)
#   All stages are linear, so the three weight matrices are pre-folded into
#   one (30, 256) matrix and the 8x8 spatial average pool is applied to the
#   30-channel input BEFORE the folded pointwise conv (linearity).
# ----------------------------------------------------------------------------
def encoder(imgs, fused_w):
    """imgs: (B, 30, D, H, W) NCDHW -> (B, D, H//8, W//8, 256) channel-last."""
    B, c_in, D, H, W = imgs.shape
    # 8x8 spatial average pooling first (68x less data into the matmul).
    x = imgs.reshape(B, c_in, D, H // 8, 8, W // 8, 8).mean(axis=(4, 6))
    Ho, Wo = H // 8, W // 8
    x = jnp.transpose(x, (0, 2, 3, 4, 1)).reshape(-1, c_in)   # (B*D*Ho*Wo, 30)
    y = pallas_matmul(x, fused_w)                             # (., 256) f32
    return y.reshape(B, D, Ho, Wo, fused_w.shape[1])


# ----------------------------------------------------------------------------
# FewShotSeg.forward
# ----------------------------------------------------------------------------
def few_shot_seg_forward(supp_imgs, fore_mask, qry_imgs, params,
                         train=False, t_loss_scaler=1.0):
    scaler = 20.0
    t = params["t"]                                           # shape (1,)
    n_ways = len(supp_imgs)
    n_shots = len(supp_imgs[0])
    n_queries = len(qry_imgs)
    batch_size = supp_imgs[0][0].shape[0]
    img_size = qry_imgs[0].shape[-3:]                         # (D, H, W)

    s_cat = jnp.concatenate([jnp.stack(way, 0) for way in supp_imgs], 0)
    q_cat = jnp.concatenate(qry_imgs, 0)

    # Matches the PyTorch reference: only supp_concat[0] is encoded
    # (module is only consistent for 1-way / 1-shot).
    all_imgs = jnp.concatenate([s_cat[0], q_cat], axis=0)
    all_fts = encoder(all_imgs, params["fused_w"])            # (B+N*B, D',H',W',C)
    s_fts = all_fts[:batch_size]
    q_fts = all_fts[batch_size:]
    Dp, Hp, Wp, C = s_fts.shape[1:]
    s_sp = Dp * Hp * Wp

    supp_fts = s_fts.reshape(n_ways, n_shots, batch_size, Dp, Hp, Wp, C)
    qry_fts = q_fts.reshape(n_queries, batch_size, Dp, Hp, Wp, C)
    fore = jnp.stack([jnp.stack(way, 0) for way in fore_mask], 0)  # (Wa,Sh,B,Dm,H,W)

    # --- getFeatures: batched masked average pooling over (way, shot, epi) ---
    G = n_ways * n_shots * batch_size
    fore_flat = fore.reshape(G, *fore.shape[3:])
    masks = jax.vmap(lambda m: nearest_resize_3d(m, (Dp, Hp, Wp)))(fore_flat)
    fts_g = supp_fts.reshape(G, s_sp, C)
    mask_g = masks.reshape(G, s_sp).astype(jnp.float32)
    proto_gc = batched_masked_avg_pool(fts_g, mask_g)         # (G, C)

    # --- getPrototype: mean over shots ---
    protos = proto_gc.reshape(n_ways, n_shots, batch_size, C).mean(axis=1)
    protos = jnp.transpose(protos, (1, 0, 2))                 # (B, Wa, C)

    # --- negSim + getPred (fused, batched over epi / ways / queries) ---
    q_bsc = jnp.transpose(qry_fts, (1, 0, 2, 3, 4, 5)).reshape(
        batch_size, n_queries * s_sp, C)
    t_arr = jnp.reshape(t, (1, 1)).astype(jnp.float32)
    pred_bws = batched_negsim_pred(q_bsc, protos, t_arr)      # (B, Wa, N*S)
    pred = pred_bws.reshape(batch_size, n_ways, n_queries, Dp, Hp, Wp)
    pred = jnp.transpose(pred, (0, 2, 1, 3, 4, 5))            # (B, N, Wa, D',H',W')

    # --- upsample + two-channel output ---
    pred_flat = pred.reshape(batch_size * n_queries, n_ways, Dp, Hp, Wp)
    pred_ups = trilinear_resize(pred_flat, img_size)          # (B*N, Wa, D, H, W)
    pred_ups = pred_ups.reshape(batch_size, n_queries, n_ways, *img_size)
    pred_ups = jnp.concatenate([1.0 - pred_ups, pred_ups], axis=2)  # (B,N,2Wa,...)

    # PyTorch stacks per-epi outputs along dim=1 -> (N, B, 2*Wa, D, H, W)
    output = jnp.transpose(pred_ups, (1, 0, 2, 3, 4, 5))
    output = output.reshape(-1, *output.shape[2:])

    # TODO(synk): alignLoss (only used when train=True) not implemented.
    align_loss = jnp.zeros((1,), jnp.float32)
    t_loss = t_loss_scaler * (t / scaler)
    return output, align_loss / batch_size, t_loss


# ----------------------------------------------------------------------------
# Deterministic parameter init (synthetic; no checkpoint loading)
# ----------------------------------------------------------------------------
def init_params():
    k0, k1, k2 = jax.random.split(jax.random.PRNGKey(42), 3)
    conv_in = 0.1 * jax.random.normal(k0, (30, 3), jnp.float32)
    # TODO(synk): resnext101(replace_stride_with_dilation=[F,T,T]) backbone is not
    # reproducible without a checkpoint; replaced by a deterministic linear stub
    # (1x1x1 conv 3->2048 + stride-(1,8,8) avg pool), which is folded below.
    stub = 0.05 * jax.random.normal(k1, (3, 2048), jnp.float32)
    conv_out = 0.02 * jax.random.normal(k2, (2048, 256), jnp.float32)
    fused_w = conv_in @ stub @ conv_out                        # (30, 256)
    return {
        "fused_w": fused_w,
        "t": jnp.array([-10.0], jnp.float32),
    }


if __name__ == "__main__":
    key = jax.random.PRNGKey(0)
    k_s, k_m, k_q = jax.random.split(key, 3)

    B, H, W = 2, 16, 16
    # way x shot x [B x 30 x 3 x H x W]
    supp_imgs = [[jax.random.normal(k_s, (B, 30, 3, H, W), jnp.float32)]]
    # way x shot x [B x 3 x H x W]  (binary masks)
    fore_mask = [[(jax.random.uniform(k_m, (B, 3, H, W)) > 0.5).astype(jnp.float32)]]
    # N x [B x 30 x 3 x H x W]
    qry_imgs = [jax.random.normal(k_q, (B, 30, 3, H, W), jnp.float32)]

    params = init_params()
    output, align_loss, t_loss = few_shot_seg_forward(
        supp_imgs, fore_mask, qry_imgs, params, train=False, t_loss_scaler=1.0
    )
    jax.block_until_ready((output, align_loss, t_loss))

    assert output.shape == (B, 2, 3, H, W), output.shape
    assert align_loss.shape == (1,) and t_loss.shape == (1,)
    assert bool(jnp.all(jnp.isfinite(output)))
    print("KERNEL_OK")
</pallas_src>

<mosaic_0001>
module attributes {stable_mosaic.version = 11 : i64} {
  func.func @_matmul_kernel(%arg0: i32, %arg1: memref<48x32xbf16, #tpu.memory_space<vmem>>, %arg2: memref<32x256xbf16, #tpu.memory_space<vmem>>, %arg3: memref<48x256xf32, #tpu.memory_space<vmem>>) attributes {dimension_semantics = [#tpu.dimension_semantics<parallel>], iteration_bounds = array<i64: 1>, scalar_prefetch = 0 : i64, scratch_operands = 0 : i64, tpu.core_type = #tpu.core_type<tc>, window_params = [{transform_indices = @transform_0, window_bounds = array<i64: 48, 32>}, {pipeline_mode = #tpu.pipeline_mode<synchronous>, transform_indices = @transform_1, window_bounds = array<i64: 32, 256>}, {transform_indices = @transform_2, window_bounds = array<i64: 48, 256>}]} {
    %c0 = arith.constant 0 : index
    %c0_0 = arith.constant 0 : index
    %0 = vector.load %arg1[%c0, %c0_0] : memref<48x32xbf16, #tpu.memory_space<vmem>>, vector<48x32xbf16>
    %c0_1 = arith.constant 0 : index
    %c0_2 = arith.constant 0 : index
    %1 = vector.load %arg2[%c0_1, %c0_2] : memref<32x256xbf16, #tpu.memory_space<vmem>>, vector<32x256xbf16>
    %cst = arith.constant dense<0.000000e+00> : vector<48x256xf32>
    %2 = tpu.matmul %0, %1, %cst {dimension_numbers = #tpu.dot_dimension_numbers<[1], [0], [0], [1], [0, 0, 1, 1], [], []>} : vector<48x32xbf16>, vector<32x256xbf16>, vector<48x256xf32> -> vector<48x256xf32>
    %c0_3 = arith.constant 0 : index
    %c0_4 = arith.constant 0 : index
    %3 = vector.load %arg3[%c0_3, %c0_4] : memref<48x256xf32, #tpu.memory_space<vmem>>, vector<48x256xf32>
    tpu.vector_store %arg3[%c0_3, %c0_4], %2 {strides = array<i32>} : memref<48x256xf32, #tpu.memory_space<vmem>>, vector<48x256xf32>,
    return
  }
  func.func @transform_0(%arg0: i32) -> (i32, i32) {
    %c0_i32 = arith.constant 0 : i32
    %c0_i32_0 = arith.constant 0 : i32
    return %arg0, %c0_i32 : i32, i32
  }
  func.func @transform_1(%arg0: i32) -> (i32, i32) {
    %c0_i32 = arith.constant 0 : i32
    %c0_i32_0 = arith.constant 0 : i32
    %c0_i32_1 = arith.constant 0 : i32
    return %c0_i32, %c0_i32_0 : i32, i32
  }
  func.func @transform_2(%arg0: i32) -> (i32, i32) {
    %c0_i32 = arith.constant 0 : i32
    %c0_i32_0 = arith.constant 0 : i32
    return %arg0, %c0_i32 : i32, i32
  }
}

</mosaic_0001>

<llo_original>
// kernel: tpu_custom_call.1
$region0: #{tpu_custom_call.1}
  #allocation0 [shape = 'u32[]', space=smem, size = 0x4, offset = 0x4, fixed_abs, tag = 'smem constant byte address 0x4 - core index']
  #allocation1 [shape = 'u32[144,128]{1,0:T(1,128)}', space=vmem, size = 0x12000, scoped, tag = 'internal scratch']
  %s0 = inlined_call_operand.vmem [shape: bf16[48,32], index: 0, kind: input, shape index: {}]
  %s1 = inlined_call_operand.vmem [shape: bf16[32,256], index: 1, kind: input, shape index: {}]
  %s2 = inlined_call_operand.hbm [shape: f32[48,256], index: 2, kind: output, shape index: {}]
  %s3 = sld [smem:[#allocation0]]
  $region18: #{tpu_custom_call.1} parent=0
    _
  %s5 = ssub.s32 1, %s3
  %s6 = scalar_select 0, %s5, %s3
  $region1: #{tpu_custom_call.1} parent=0
    #allocation2 [shape = 'u8[49152]{0}', space=vmem, size = 0xc000, scoped, tag = 'output window, operand 0, single buffered']
    #allocation3 [shape = 's32[1]{0}', space=sflag, size = 0x4, scoped, tag = 'scoped memory for tpu_custom_call.1']
    %7 = vsyncpa [#allocation3], 0
    // Predicated region
    $region2: #{tpu_custom_call.1} parent=1 // pred_check
      _
    $region3: #{tpu_custom_call.1} parent=1 // pred_check_branch
      %9 = sbr.rel (0) target = $region5
    $region4: #{tpu_custom_call.1} parent=1 // pred_region
      _
    $region5: #{tpu_custom_call.1} parent=1 // pred_fallthru
      _
    // Predicated region
    $region6: #{tpu_custom_call.1} parent=1 // pred_check
      _
    $region7: #{tpu_custom_call.1} parent=1 // pred_check_branch
      %11 = sbr.rel (0) target = $region9
    $region8: #{tpu_custom_call.1} parent=1 // pred_region
      _
    $region9: #{tpu_custom_call.1} parent=1 // pred_fallthru
      _
    %v13 = vld [vmem:[%s0] sm:$0xf]
    %v14 = vld [vmem:[%s0 + $0x4] sm:$0xf]
    %v15 = vld [vmem:[%s0 + $0x8] sm:$0xf]
    %v16 = vld [vmem:[%s0 + $0xc] sm:$0xf]
    %v17 = vld [vmem:[%s0 + $0x10] sm:$0xf]
    %v18 = vld [vmem:[%s0 + $0x14] sm:$0xf]
    %v19 = vld [vmem:[%s1] sm:$0xff]
    %v20 = vld [vmem:[%s1 + $0x8] sm:$0xff]
    %v21 = vld [vmem:[%s1 + $0x10] sm:$0xff]
    %v22 = vld [vmem:[%s1 + $0x18] sm:$0xff]
    %v29 = vunpack.c.l.b16 %v13
    %v30 = vunpack.c.l.b16 %v14
    %v31 = vunpack.c.l.b16 %v15
    %v32 = vunpack.c.l.b16 %v16
    %v33 = vunpack.c.l.b16 %v17
    %v34 = vunpack.c.l.b16 %v18
    %v35 = vpack.c.b16 %v30, %v29
    %v36 = vpack.c.b16 %v32, %v31
    %v37 = vpack.c.b16 %v34, %v33
    %v42 = vunpack.c.l.b16 %v19
    %v43 = vunpack.c.h.b16 %v19
    %v44 = vunpack.c.l.b16 %v20
    %v45 = vunpack.c.h.b16 %v20
    %v46 = vunpack.c.l.b16 %v21
    %v47 = vunpack.c.h.b16 %v21
    %v48 = vunpack.c.l.b16 %v22
    %v49 = vunpack.c.h.b16 %v22
    %v50 = vpack.c.b16 %v44, %v42
    %v51 = vpack.c.b16 %v45, %v43
    %v52 = vpack.c.b16 %v48, %v46
    %v53 = vpack.c.b16 %v49, %v47
    %vm58 = vcmask 261120
    %v60 = vsel %vm58, %v35, 0
    %v63 = vsel %vm58, %v36, 0
    %v66 = vsel %vm58, %v37, 0
    %68 = vmatprep.subr.bf16.mxu0 %v51
    %69 = vmatpush1.bf16.msra.mxu0 %v50
    %70 = vmatprep.subr.bf16.mxu0 %v53
    %71 = vmatpush1.bf16.msra.mxu0 %v52
    %72 = vmatprep.subr.bf16.mxu0 0
    %73 = vmatpush1.bf16.msra.mxu0 0
    %74 = vmatprep.subr.bf16.mxu0 0
    %75 = vmatpush1.bf16.msra.mxu0 0
    %76 = vmatprep.subr.bf16.mxu0 0
    %77 = vmatpush1.bf16.msra.mxu0 0
    %78 = vmatprep.subr.bf16.mxu0 0
    %79 = vmatpush1.bf16.msra.mxu0 0
    %80 = vmatprep.subr.bf16.mxu0 0
    %81 = vmatpush1.bf16.msra.mxu0 0
    %82 = vmatprep.subr.bf16.mxu0 0
    %83 = vmatpush1.bf16.msra.mxu0 0
    %84 = vmatprep.subr.bf16.mxu0 0
    %85 = vmatpush1.bf16.msra.mxu0 0
    %86 = vmatprep.subr.bf16.mxu0 0
    %87 = vmatpush1.bf16.msra.mxu0 0
    %88 = vmatprep.subr.bf16.mxu0 0
    %89 = vmatpush1.bf16.msra.mxu0 0
    %90 = vmatprep.subr.bf16.mxu0 0
    %91 = vmatpush1.bf16.msra.mxu0 0
    %92 = vmatprep.subr.bf16.mxu0 0
    %93 = vmatpush1.bf16.msra.mxu0 0
    %94 = vmatprep.subr.bf16.mxu0 0
    %95 = vmatpush1.bf16.msra.mxu0 0
    %96 = vmatprep.subr.bf16.mxu0 0
    %97 = vmatpush1.bf16.msra.mxu0 0
    %98 = vmatprep.subr.bf16.mxu0 0
    %99 = vmatpush1.bf16.msra.mxu0 0
    %100 = vmatprep.mubr.bf16.mxu0 0
    %101 = vmatmul.mubr.bf16.gmra.mrb[0].mxu0 %v60
    %v102 = vpop.f32.mrb[0].mxu0
    %v103 = vadd.f32 0.0, %v102
    %v104 = vpop.f32.mrb[0].mxu0
    %v105 = vadd.f32 0.0, %v104
    %v106 = vpop.f32.mrb[0].mxu0
    %v107 = vadd.f32 0.0, %v106
    %v108 = vpop.f32.mrb[0].mxu0
    %v109 = vadd.f32 0.0, %v108
    %110 = vmatprep.mubr.bf16.mxu0 0
    %111 = vmatmul.mubr.bf16.gmra.mrb[0].mxu0 %v63
    %v112 = vpop.f32.mrb[0].mxu0
    %v113 = vadd.f32 0.0, %v112
    %v114 = vpop.f32.mrb[0].mxu0
    %v115 = vadd.f32 0.0, %v114
    %v116 = vpop.f32.mrb[0].mxu0
    %v117 = vadd.f32 0.0, %v116
    %v118 = vpop.f32.mrb[0].mxu0
    %v119 = vadd.f32 0.0, %v118
    %120 = vmatprep.mubr.bf16.mxu0 0
    %121 = vmatmul.mubr.bf16.gmra.mrb[0].mxu0 %v66
    %v122 = vpop.f32.mrb[0].mxu0
    %v123 = vadd.f32 0.0, %v122
    %v124 = vpop.f32.mrb[0].mxu0
    %v125 = vadd.f32 0.0, %v124
    %v126 = vpop.f32.mrb[0].mxu0
    %v127 = vadd.f32 0.0, %v126
    %v128 = vpop.f32.mrb[0].mxu0
    %v129 = vadd.f32 0.0, %v128
    %130 = vdwg.mxu0
    %131 = vst [vmem:[#allocation2] sm:$0xff] %v103
    %132 = vst [vmem:[#allocation2 + $0x8] sm:$0xff] %v105
    %133 = vst [vmem:[#allocation2 + $0x10] sm:$0xff] %v107
    %134 = vst [vmem:[#allocation2 + $0x18] sm:$0xff] %v109
    %135 = vst [vmem:[#allocation2 + $0x20] sm:$0xff] %v113
    %136 = vst [vmem:[#allocation2 + $0x28] sm:$0xff] %v115
    %137 = vst [vmem:[#allocation2 + $0x30] sm:$0xff] %v117
    %138 = vst [vmem:[#allocation2 + $0x38] sm:$0xff] %v119
    %139 = vst [vmem:[#allocation2 + $0x40] sm:$0xff] %v123
    %140 = vst [vmem:[#allocation2 + $0x48] sm:$0xff] %v125
    %141 = vst [vmem:[#allocation2 + $0x50] sm:$0xff] %v127
    %142 = vst [vmem:[#allocation2 + $0x58] sm:$0xff] %v129
    // Predicated region
    $region10: #{tpu_custom_call.1} parent=1 // pred_check
      _
    $region11: #{tpu_custom_call.1} parent=1 // pred_check_branch
      %144 = sbr.rel (0) target = $region13
    $region12: #{tpu_custom_call.1} parent=1 // pred_region
      %s146 = ssub.s32 1536, 1536
      %147 = vsyncadd [#allocation3], %s146
      %s148 = sshll.u32 [#allocation2], 4
      %s149 = int_to_ptr.vmem [resolvable:$true] %s148
      %154 = dma.vmem_to_hbm [thread:$0]  %s149, 1536, %s2, [#allocation3], 256, 256, 16
    $region13: #{tpu_custom_call.1} parent=1 // pred_fallthru
      _
    // Predicated region
    $region14: #{tpu_custom_call.1} parent=1 // pred_check
      _
    $region15: #{tpu_custom_call.1} parent=1 // pred_check_branch
      %156 = sbr.rel (0) target = $region17
    $region16: #{tpu_custom_call.1} parent=1 // pred_region
      %157 = dma.done [#allocation3], 1536
    $region17: #{tpu_custom_call.1} parent=1 // pred_fallthru
      _
    %158 = vsyncpa [#allocation3], 1

</llo_original>
